<compile_context>
chip_gen: v7x
topology: tpu7x:2x2x1
jax: 0.10.0
libtpu: 0.0.40
codegen_flags: <defaults>
</compile_context>

<pallas_src>
import functools
import math

import jax
import jax.numpy as jnp
from jax.experimental import pallas as pl
from jax.experimental.pallas import tpu as pltpu


def _output_layer_kernel(x_ref, bias_ref, o_ref, *, use_bias: bool, compute_dtype):
    """Fused elementwise hot path: x + scalar_bias, then sigmoid."""
    y = x_ref[...].astype(compute_dtype)
    if use_bias:
        y = y + bias_ref[0].astype(compute_dtype)  # scalar bias broadcast (SMEM)
    # sigmoid(y) = 1 / (1 + exp(-y)).  exp -> EUP; approx reciprocal -> EUP,
    # so the VALU only does the add/cast and the kernel stays DMA-bound.
    out = pl.reciprocal(1.0 + jnp.exp(-y), approx=True)
    o_ref[...] = out.astype(o_ref.dtype)


def _choose_tile(n_elems: int, itemsize: int):
    """Pick a lane-dense (rows, lanes) tile ~2 MiB per buffer, shrunk for tiny inputs."""
    lane = 512                        # multiple of 128 -> unmasked vst stores
    target_bytes = 2 * 1024 * 1024    # ~2 MiB per buffer
    tb = max(8, min(1024, target_bytes // (lane * itemsize)))
    tb -= tb % 8                      # sublane-aligned
    # Shrink for small inputs so a toy batch isn't padded out to 2 MiB.
    while tb > 8 and (tb // 2) * lane >= n_elems:
        tb //= 2
    while lane > 128 and tb * (lane // 2) >= n_elems:
        lane //= 2
    return tb, lane


def output_layer(x: jax.Array, bias: jax.Array, *, use_bias: bool = True) -> jax.Array:
    """Pallas implementation of OutputLayer.forward (output_fn == sigmoid).

    x:    arbitrary-shape float array.
    bias: (1,) float scalar parameter (ignored if use_bias=False, but still
          passed so the kernel signature is uniform).
    """
    orig_shape = x.shape
    orig_dtype = x.dtype
    n = int(math.prod(orig_shape)) if orig_shape else 1

    tb, lane = _choose_tile(n, jnp.dtype(orig_dtype).itemsize)
    tile_elems = tb * lane
    num_tiles = max(1, -(-n // tile_elems))  # cdiv
    n_pad = num_tiles * tile_elems

    flat = jnp.reshape(x, (-1,))
    if n_pad != n:
        flat = jnp.pad(flat, (0, n_pad - n))  # zero padding; sigmoid is safe on it
    x2d = jnp.reshape(flat, (num_tiles * tb, lane))

    # bf16 math is native on v6e/v7x; everything else computes in f32.
    compute_dtype = jnp.bfloat16 if orig_dtype == jnp.bfloat16 else jnp.float32
    kernel = functools.partial(
        _output_layer_kernel, use_bias=use_bias, compute_dtype=compute_dtype
    )

    out2d = pl.pallas_call(
        kernel,
        out_shape=jax.ShapeDtypeStruct(x2d.shape, orig_dtype),
        grid=(num_tiles,),
        in_specs=[
            # Lane-dense row tiles, auto-pipelined (double-buffered) by Pallas.
            pl.BlockSpec((tb, lane), lambda i: (i, 0)),
            # Scalar bias lives in SMEM, untiled.
            pl.BlockSpec(memory_space=pltpu.MemorySpace.SMEM),
        ],
        out_specs=pl.BlockSpec((tb, lane), lambda i: (i, 0)),
        # Elementwise, same shape/dtype: reuse the (temporary) padded input buffer.
        input_output_aliases={0: 0},
        compiler_params=pltpu.CompilerParams(
            dimension_semantics=("parallel",),  # v7x: shard row tiles over 2 TCs
        ),
    )(x2d, bias.astype(jnp.float32))

    out = jnp.reshape(out2d, (-1,))[:n]
    return jnp.reshape(out, orig_shape)


def output_layer_ref(x, bias, use_bias=True):
    y = x.astype(jnp.float32)
    if use_bias:
        y = y + bias[0]
    return jax.nn.sigmoid(y).astype(x.dtype)


if __name__ == "__main__":
    # TODO(synk): output_fn is user-supplied in the PyTorch module; only the
    # canonical sigmoid head is fused here.
    key = jax.random.PRNGKey(0)

    # --- small shape matching the module's canonical use (batch=2, hidden=32) ---
    batch, hidden = 2, 32
    x = jax.random.normal(key, (batch, hidden), dtype=jnp.float32)
    bias = jnp.zeros((1,), dtype=jnp.float32)  # matches nn.Parameter(torch.zeros((1,)))

    out = jax.block_until_ready(output_layer(x, bias, use_bias=True))
    ref = output_layer_ref(x, bias, use_bias=True)
    assert out.shape == x.shape and out.dtype == x.dtype
    assert jnp.allclose(out, ref, atol=5e-3, rtol=5e-3), float(jnp.max(jnp.abs(out - ref)))

    # --- use_bias=False branch ---
    out_nb = jax.block_until_ready(output_layer(x, bias, use_bias=False))
    ref_nb = output_layer_ref(x, bias, use_bias=False)
    assert jnp.allclose(out_nb, ref_nb, atol=5e-3, rtol=5e-3)

    # --- larger, non-128-aligned shape: exercises padding, multi-tile grid,
    #     pipelining and nonzero bias ---
    k2, k3 = jax.random.split(jax.random.PRNGKey(1))
    x_big = jax.random.normal(k2, (2048, 384), dtype=jnp.float32)
    bias_big = jnp.array([0.25], dtype=jnp.float32)
    out_big = jax.block_until_ready(output_layer(x_big, bias_big, use_bias=True))
    ref_big = output_layer_ref(x_big, bias_big, use_bias=True)
    assert out_big.shape == x_big.shape and out_big.dtype == x_big.dtype
    assert jnp.allclose(out_big, ref_big, atol=5e-3, rtol=5e-3)

    print("KERNEL_OK")
</pallas_src>

<mosaic_0001>
module attributes {stable_mosaic.version = 11 : i64} {
  func.func @_output_layer_kernel(%arg0: i32, %arg1: memref<8x128xf32, #tpu.memory_space<vmem>>, %arg2: memref<1xf32, #tpu.memory_space<smem>>, %arg3: memref<8x128xf32, #tpu.memory_space<vmem>>) attributes {dimension_semantics = [#tpu.dimension_semantics<parallel>], iteration_bounds = array<i64: 1>, scalar_prefetch = 0 : i64, scratch_operands = 0 : i64, tpu.core_type = #tpu.core_type<tc>, window_params = [{transform_indices = @transform_0, window_bounds = array<i64: 8, 128>}, {transform_indices = @transform_1, window_bounds = array<i64: 1>}, {transform_indices = @transform_2, window_bounds = array<i64: 8, 128>}]} {
    %c0 = arith.constant 0 : index
    %c0_0 = arith.constant 0 : index
    %0 = vector.load %arg1[%c0, %c0_0] : memref<8x128xf32, #tpu.memory_space<vmem>>, vector<8x128xf32>
    %c0_1 = arith.constant 0 : index
    %1 = memref.load %arg2[%c0_1] : memref<1xf32, #tpu.memory_space<smem>>
    %2 = vector.broadcast %1 : f32 to vector<8x128xf32>
    %3 = arith.addf %0, %2 : vector<8x128xf32>
    %cst = arith.constant 0.000000e+00 : f32
    %4 = vector.broadcast %cst : f32 to vector<8x128xf32>
    %5 = arith.subf %4, %3 : vector<8x128xf32>
    %6 = math.exp %5 : vector<8x128xf32>
    %cst_2 = arith.constant 1.000000e+00 : f32
    %7 = vector.broadcast %cst_2 : f32 to vector<8x128xf32>
    %8 = arith.addf %7, %6 : vector<8x128xf32>
    %9 = tpu.reciprocal %8 {approx = true} : vector<8x128xf32> -> vector<8x128xf32>
    %c0_3 = arith.constant 0 : index
    %c0_4 = arith.constant 0 : index
    %10 = vector.load %arg3[%c0_3, %c0_4] : memref<8x128xf32, #tpu.memory_space<vmem>>, vector<8x128xf32>
    tpu.vector_store %arg3[%c0_3, %c0_4], %9 {strides = array<i32>} : memref<8x128xf32, #tpu.memory_space<vmem>>, vector<8x128xf32>,
    return
  }
  func.func @transform_0(%arg0: i32) -> (i32, i32) {
    %c0_i32 = arith.constant 0 : i32
    %c0_i32_0 = arith.constant 0 : i32
    return %arg0, %c0_i32 : i32, i32
  }
  func.func @transform_1(%arg0: i32) -> i32 {
    %c0_i32 = arith.constant 0 : i32
    %c0_i32_0 = arith.constant 0 : i32
    return %c0_i32 : i32
  }
  func.func @transform_2(%arg0: i32) -> (i32, i32) {
    %c0_i32 = arith.constant 0 : i32
    %c0_i32_0 = arith.constant 0 : i32
    return %arg0, %c0_i32 : i32, i32
  }
}

</mosaic_0001>

<llo_original>
// kernel: tpu_custom_call.1
$region0: #{tpu_custom_call.1}
  #allocation0 [shape = 'u32[]', space=smem, size = 0x4, offset = 0x4, fixed_abs, tag = 'smem constant byte address 0x4 - core index']
  #allocation1 [shape = 'u32[144,128]{1,0:T(1,128)}', space=vmem, size = 0x12000, scoped, tag = 'internal scratch']
  #allocation2 [shape = 'f32[1]{0:T(128)S(6)}', space=smem, size = 0x200, scoped, tag = 'scoped memory for tpu_custom_call.1']
  %s0 = inlined_call_operand.hbm [shape: f32[8,128], index: 0, kind: input, shape index: {}, may-alias: {0,2}]
  %s1 = inlined_call_operand.<no memory space> [shape: f32[1], index: 1, kind: input, shape index: {}]
  %s2 = inlined_call_operand.hbm [shape: f32[8,128], index: 2, kind: output, shape index: {}, may-alias: {0,2}]
  %s3 = sld [smem:[#allocation0]]
  $region22: #{tpu_custom_call.1} parent=0
    _
  %s5 = ssub.s32 1, %s3
  %s6 = scalar_select 0, %s5, %s3
  %7 = sst [smem:[#allocation2]] %s1
  $region1: #{tpu_custom_call.1} parent=0
    #allocation3 [shape = 'u8[4096]{0}', space=vmem, size = 0x1000, scoped, tag = 'input window, operand 0, single buffered']
    #allocation4 [shape = 's32[1]{0}', space=sflag, size = 0x4, scoped, tag = 'scoped memory for tpu_custom_call.1']
    #allocation5 [shape = 's32[1]{0}', space=sflag, size = 0x4, scoped, tag = 'scoped memory for tpu_custom_call.1']
    #allocation6 [shape = 'u8[4096]{0}', space=vmem, size = 0x1000, scoped, tag = 'output window, operand 0, single buffered']
    %8 = vsyncpa [#allocation4], 0
    %9 = vsyncpa [#allocation5], 0
    // Predicated region
    $region2: #{tpu_custom_call.1} parent=1 // pred_check
      _
    $region3: #{tpu_custom_call.1} parent=1 // pred_check_branch
      %11 = sbr.rel (0) target = $region5
    $region4: #{tpu_custom_call.1} parent=1 // pred_region
      %s13 = ssub.s32 128, 128
      %14 = vsyncadd [#allocation4], %s13
      %s16 = sshll.u32 [#allocation3], 4
      %s17 = int_to_ptr.vmem [resolvable:$true] %s16
      %19 = dma.hbm_to_vmem [thread:$0]  %s0, 128, %s17, [#allocation4]
    $region5: #{tpu_custom_call.1} parent=1 // pred_fallthru
      _
    // Predicated region
    $region6: #{tpu_custom_call.1} parent=1 // pred_check
      _
    $region7: #{tpu_custom_call.1} parent=1 // pred_check_branch
      %21 = sbr.rel (0) target = $region9
    $region8: #{tpu_custom_call.1} parent=1 // pred_region
      _
    $region9: #{tpu_custom_call.1} parent=1 // pred_fallthru
      _
    // Predicated region
    $region10: #{tpu_custom_call.1} parent=1 // pred_check
      _
    $region11: #{tpu_custom_call.1} parent=1 // pred_check_branch
      %23 = sbr.rel (0) target = $region13
    $region12: #{tpu_custom_call.1} parent=1 // pred_region
      %24 = dma.done [#allocation4], 128
    $region13: #{tpu_custom_call.1} parent=1 // pred_fallthru
      _
    %v25 = vld [vmem:[#allocation3] sm:$0xff]
    %s26 = sld [smem:[#allocation2]]
    %v27 = vstv %s26
    %v28 = vadd.f32 %v25, %v27
    %v29 = vsub.f32 0.0, %v28
    %v30 = vmul.f32 %v29, 1.442695
    %v31 = vpow.pop %v30
    %v32 = vadd.f32 %v31, 1.0
    %v33 = vrcp.pop %v32
    %34 = vst [vmem:[#allocation6] sm:$0xff] %v33
    // Predicated region
    $region14: #{tpu_custom_call.1} parent=1 // pred_check
      _
    $region15: #{tpu_custom_call.1} parent=1 // pred_check_branch
      %36 = sbr.rel (0) target = $region17
    $region16: #{tpu_custom_call.1} parent=1 // pred_region
      %s38 = ssub.s32 128, 128
      %39 = vsyncadd [#allocation5], %s38
      %s41 = sshll.u32 [#allocation6], 4
      %s42 = int_to_ptr.vmem [resolvable:$true] %s41
      %44 = dma.vmem_to_hbm [thread:$0]  %s42, 128, %s2, [#allocation5]
    $region17: #{tpu_custom_call.1} parent=1 // pred_fallthru
      _
    // Predicated region
    $region18: #{tpu_custom_call.1} parent=1 // pred_check
      _
    $region19: #{tpu_custom_call.1} parent=1 // pred_check_branch
      %46 = sbr.rel (0) target = $region21
    $region20: #{tpu_custom_call.1} parent=1 // pred_region
      %47 = dma.done [#allocation5], 128
    $region21: #{tpu_custom_call.1} parent=1 // pred_fallthru
      _
    %48 = vsyncpa [#allocation4], 1
    %49 = vsyncpa [#allocation5], 1

</llo_original>
